<compile_context>
chip_gen: v7x
topology: tpu7x:2x2x1
jax: 0.10.0
libtpu: 0.0.40
codegen_flags: <defaults>
</compile_context>

<pallas_src>
import functools
import math

import jax
import jax.numpy as jnp
from jax import lax
from jax.experimental import pallas as pl
from jax.experimental.pallas import tpu as pltpu


def _round_up(x: int, m: int) -> int:
    return (x + m - 1) // m * m


# --------------------------------------------------------------------------
# Kernel 1: fused QKV projection (all heads in one matmul, feature-major out)
# --------------------------------------------------------------------------
def _qkv_proj_kernel(xT_ref, w_ref, qkvT_ref):
    # w_ref:    (3*H*hd_p, d_in_pad) bf16 (q rows pre-scaled by 1/sqrt(head_dim))
    # xT_ref:   (1, d_in_pad, t_proj) bf16  -- tokens along lanes
    # qkvT_ref: (1, 3*H*hd_p, t_proj) bf16
    qkvT_ref[0] = jnp.dot(
        w_ref[...], xT_ref[0], preferred_element_type=jnp.float32
    ).astype(qkvT_ref.dtype)


# --------------------------------------------------------------------------
# Kernel 2: flash attention (online softmax) with fused output projection
# --------------------------------------------------------------------------
def _flash_mha_kernel(qT_ref, kT_ref, vT_ref, wo_ref, bo_ref, o_ref,
                      m_sc, l_sc, ctx_sc, out_sc, *, tq, tkv, seq_len):
    i = pl.program_id(1)           # query tile
    h = pl.program_id(2)           # head             ("arbitrary")
    j = pl.program_id(3)           # kv tile          ("arbitrary", innermost)
    nh = pl.num_programs(2)
    nj = pl.num_programs(3)

    @pl.when(j == 0)
    def _():
        m_sc[...] = jnp.full_like(m_sc, -1e30)
        l_sc[...] = jnp.zeros_like(l_sc)
        ctx_sc[...] = jnp.zeros_like(ctx_sc)

    @pl.when((h == 0) & (j == 0))
    def _():
        out_sc[...] = jnp.zeros_like(out_sc)

    # KV blocks entirely above the causal diagonal contribute nothing.
    needed = j * tkv < (i + 1) * tq
    # Blocks fully inside the causal region and free of key padding need no mask.
    interior = needed & ((j + 1) * tkv - 1 <= i * tq) & ((j + 1) * tkv <= seq_len)

    def online_softmax_step(masked):
        qT = qT_ref[0]                                     # (hd_p, tq)  bf16
        kT = kT_ref[0]                                     # (hd_p, tkv) bf16
        vT = vT_ref[0]                                     # (hd_p, tkv) bf16
        # sT[k, q] = sum_d kT[d, k] * qT[d, q]  -> (tkv, tq) f32
        sT = lax.dot_general(kT, qT, (((0,), (0,)), ((), ())),
                             preferred_element_type=jnp.float32)
        m_prev = m_sc[...]
        if masked:
            k_pos = j * tkv + lax.broadcasted_iota(jnp.int32, (tkv, tq), 0)
            q_pos = i * tq + lax.broadcasted_iota(jnp.int32, (tkv, tq), 1)
            keep = (k_pos <= q_pos) & (k_pos < seq_len)
            m_cur = jnp.max(jnp.where(keep, sT, -1e30), axis=0, keepdims=True)
            m_new = jnp.maximum(m_prev, m_cur)
            p = jnp.where(keep, jnp.exp(sT - m_new), 0.0)
        else:
            m_cur = jnp.max(sT, axis=0, keepdims=True)
            m_new = jnp.maximum(m_prev, m_cur)
            p = jnp.exp(sT - m_new)
        alpha = jnp.exp(m_prev - m_new)                    # (1, tq)
        l_sc[...] = alpha * l_sc[...] + jnp.sum(p, axis=0, keepdims=True)
        ctx_sc[...] = alpha * ctx_sc[...] + jnp.dot(
            vT, p.astype(vT.dtype), preferred_element_type=jnp.float32)
        m_sc[...] = m_new

    @pl.when(interior)
    def _():
        online_softmax_step(masked=False)

    @pl.when(needed & jnp.logical_not(interior))
    def _():
        online_softmax_step(masked=True)

    # Per-head epilogue: fold this head's context into the fused out-projection.
    # TODO(synk): attention-weight dropout is identity here (eval mode).
    @pl.when(j == nj - 1)
    def _():
        inv_l = pl.reciprocal(l_sc[...], approx=True)              # (1, tq)
        ctxT = (ctx_sc[...] * inv_l).astype(wo_ref.dtype)          # (hd_p, tq)
        out_sc[...] += lax.dot_general(
            ctxT, wo_ref[0], (((0,), (0,)), ((), ())),
            preferred_element_type=jnp.float32)                    # (tq, d_out_pad)

    @pl.when((h == nh - 1) & (j == nj - 1))
    def _():
        o_ref[0] = (out_sc[...] + bo_ref[...]).astype(o_ref.dtype)


# --------------------------------------------------------------------------
# Weight preparation (plain JAX, outside the kernels)
# --------------------------------------------------------------------------
def _fused_qkv_weight(wq, wk, wv, num_heads, head_dim, hd_p, d_in_pad, scale):
    d_in = wq.shape[0]

    def per_head(w, s):
        wt = (w * s).T.reshape(num_heads, head_dim, d_in)          # (H, hd, d_in)
        return jnp.pad(wt, ((0, 0), (0, hd_p - head_dim), (0, d_in_pad - d_in)))

    w_all = jnp.concatenate(
        [per_head(wq, scale), per_head(wk, 1.0), per_head(wv, 1.0)], axis=0)
    return w_all.reshape(3 * num_heads * hd_p, d_in_pad).astype(jnp.bfloat16)


def _split_out_proj(wo, num_heads, head_dim, hd_p, d_out_pad):
    d_out = wo.shape[1]
    woh = wo.reshape(num_heads, head_dim, d_out)                   # (H, hd, d_out)
    woh = jnp.pad(woh, ((0, 0), (0, hd_p - head_dim), (0, d_out_pad - d_out)))
    return woh.astype(jnp.bfloat16)


def _tpu_defaults():
    """Generation-gated kv-tile width and VMEM limit (with headroom)."""
    kind = ""
    try:
        kind = jax.devices()[0].device_kind.lower()
    except Exception:
        pass
    # v6e / v7x have a 256-wide MXU; v5e (and unknown) stay at 128.
    wide_mxu = ("v6" in kind) or ("v7" in kind) or ("7x" in kind)
    try:
        vmem_cap = int(pltpu.get_tpu_info().vmem_capacity_bytes)
    except Exception:
        vmem_cap = 64 * 1024 * 1024
    vmem_limit = int(min(96 * 1024 * 1024, (vmem_cap * 3) // 4))
    return wide_mxu, vmem_limit


# --------------------------------------------------------------------------
# Wrapper
# --------------------------------------------------------------------------
def multi_head_attention(x, wq, wk, wv, wo, bo, *, num_heads):
    """x: (B, T, d_in). wq/wk/wv: (d_in, d_out), wo: (d_out, d_out), bo: (d_out,)."""
    b, t, d_in = x.shape
    d_out = wq.shape[1]
    assert d_out % num_heads == 0
    head_dim = d_out // num_heads
    scale = 1.0 / math.sqrt(head_dim)

    wide_mxu, vmem_limit = _tpu_defaults()

    hd_p = _round_up(head_dim, 16)            # bf16 sublane packing only, NOT 128
    d_in_pad = _round_up(d_in, 128)
    d_out_pad = _round_up(d_out, 128)
    f_all = 3 * num_heads * hd_p

    tq = 128
    tkv = 256 if (wide_mxu and t > 128) else 128
    tp = _round_up(t, max(tq, tkv))
    nq, nkv = tp // tq, tp // tkv
    tproj = next(c for c in (512, 256, 128) if tp % c == 0)

    # Operand prep (plain XLA): pad + transpose x, fuse/scale/pack weights.
    xT = jnp.pad(x, ((0, 0), (0, tp - t), (0, d_in_pad - d_in)))
    xT = jnp.transpose(xT, (0, 2, 1)).astype(jnp.bfloat16)          # (B, d_in_pad, Tp)
    w_all = _fused_qkv_weight(wq, wk, wv, num_heads, head_dim, hd_p, d_in_pad, scale)
    wo_h = _split_out_proj(wo, num_heads, head_dim, hd_p, d_out_pad)
    bo_p = jnp.pad(bo, (0, d_out_pad - d_out)).reshape(1, d_out_pad).astype(jnp.float32)

    # ---- 1) fused QKV projection: grid (B, token_tiles), x read exactly once ----
    def project(single_buffer_weight):
        w_kwargs = {"pipeline_mode": pl.Buffered(1)} if single_buffer_weight else {}
        return pl.pallas_call(
            _qkv_proj_kernel,
            out_shape=jax.ShapeDtypeStruct((b, f_all, tp), jnp.bfloat16),
            grid_spec=pltpu.PrefetchScalarGridSpec(
                num_scalar_prefetch=0,
                grid=(b, tp // tproj),
                in_specs=[
                    pl.BlockSpec((1, d_in_pad, tproj), lambda bi, ti: (bi, 0, ti)),
                    pl.BlockSpec((f_all, d_in_pad), lambda bi, ti: (0, 0), **w_kwargs),
                ],
                out_specs=pl.BlockSpec((1, f_all, tproj), lambda bi, ti: (bi, 0, ti)),
            ),
            compiler_params=pltpu.CompilerParams(
                dimension_semantics=("parallel", "parallel"),
                vmem_limit_bytes=vmem_limit),
        )(xT, w_all)

    try:
        qkvT = project(True)    # grid-constant weight block -> single-buffered
    except Exception:
        qkvT = project(False)   # pl.Buffered(1) unsupported: default double buffering

    # ---- 2) flash attention + fused output projection --------------------------
    def last_kv(i):
        return jnp.minimum.outputs if False else ((i + 1) * tq - 1) // tkv  # noqa: E501

    out_padded = pl.pallas_call(
        functools.partial(_flash_mha_kernel, tq=tq, tkv=tkv, seq_len=t),
        out_shape=jax.ShapeDtypeStruct((b, tp, d_out_pad), x.dtype),
        grid_spec=pltpu.PrefetchScalarGridSpec(
            num_scalar_prefetch=0,
            grid=(b, nq, num_heads, nkv),
            in_specs=[
                # q / k / v are per-head sublane slabs of the single qkvT array.
                pl.BlockSpec((1, hd_p, tq),
                             lambda bi, i, h, j: (bi, h, i)),
                # Clamp skipped upper-triangle blocks onto the last needed block
                # so their K/V tiles are never re-DMA'd.
                pl.BlockSpec((1, hd_p, tkv),
                             lambda bi, i, h, j: (bi, num_heads + h,
                                                  jnp.minimum(j, last_kv(i)))),
                pl.BlockSpec((1, hd_p, tkv),
                             lambda bi, i, h, j: (bi, 2 * num_heads + h,
                                                  jnp.minimum(j, last_kv(i)))),
                pl.BlockSpec((1, hd_p, d_out_pad), lambda bi, i, h, j: (h, 0, 0)),
                pl.BlockSpec((1, d_out_pad), lambda bi, i, h, j: (0, 0)),
            ],
            out_specs=pl.BlockSpec((1, tq, d_out_pad),
                                   lambda bi, i, h, j: (bi, i, 0)),
            scratch_shapes=[
                pltpu.VMEM((1, tq), jnp.float32),           # running max
                pltpu.VMEM((1, tq), jnp.float32),           # running sum
                pltpu.VMEM((hd_p, tq), jnp.float32),        # per-head ctx^T acc
                pltpu.VMEM((tq, d_out_pad), jnp.float32),   # fused out-proj acc
            ],
        ),
        compiler_params=pltpu.CompilerParams(
            dimension_semantics=("parallel", "parallel", "arbitrary", "arbitrary"),
            vmem_limit_bytes=vmem_limit),
    )(qkvT, qkvT, qkvT, wo_h, bo_p)

    return out_padded[:, :t, :d_out]


# --------------------------------------------------------------------------
# Parameter init & pure-JAX reference (mirrors the PyTorch module, eval mode)
# --------------------------------------------------------------------------
def init_params(key, d_in, d_out):
    """PyTorch Linear stores weight as (out, in); we build (in, out) = W.T directly."""
    k1, k2, k3, k4, k5 = jax.random.split(key, 5)
    s_in = 1.0 / math.sqrt(d_in)
    s_out = 1.0 / math.sqrt(d_out)
    wq = jax.random.uniform(k1, (d_in, d_out), jnp.float32, -s_in, s_in)
    wk = jax.random.uniform(k2, (d_in, d_out), jnp.float32, -s_in, s_in)
    wv = jax.random.uniform(k3, (d_in, d_out), jnp.float32, -s_in, s_in)
    wo = jax.random.uniform(k4, (d_out, d_out), jnp.float32, -s_out, s_out)
    bo = jax.random.uniform(k5, (d_out,), jnp.float32, -s_out, s_out)
    return wq, wk, wv, wo, bo


def reference_mha(x, wq, wk, wv, wo, bo, num_heads):
    b, t, d_in = x.shape
    d_out = wq.shape[1]
    hd = d_out // num_heads
    q = (x @ wq).reshape(b, t, num_heads, hd).transpose(0, 2, 1, 3)
    k = (x @ wk).reshape(b, t, num_heads, hd).transpose(0, 2, 1, 3)
    v = (x @ wv).reshape(b, t, num_heads, hd).transpose(0, 2, 1, 3)
    scores = jnp.einsum("bhqd,bhkd->bhqk", q, k)
    mask = jnp.triu(jnp.ones((t, t), bool), k=1)
    scores = jnp.where(mask, -jnp.inf, scores)
    w = jax.nn.softmax(scores / math.sqrt(hd), axis=-1)
    ctx = jnp.einsum("bhqk,bhkd->bhqd", w, v).transpose(0, 2, 1, 3).reshape(b, t, d_out)
    return ctx @ wo + bo


if __name__ == "__main__":
    key = jax.random.PRNGKey(0)

    configs = [
        # (B, T, D_IN, D_OUT, NUM_HEADS)
        (2, 8, 32, 32, 4),     # tiny shapes from the chapter (head_dim=8)
        (2, 160, 96, 64, 4),   # exercises tiling, causal block skip, padding
    ]
    for (B, T, D_IN, D_OUT, H) in configs:
        kx, kp, key = jax.random.split(key, 3)
        x = jax.random.normal(kx, (B, T, D_IN), jnp.float32)
        wq, wk, wv, wo, bo = init_params(kp, D_IN, D_OUT)

        out = multi_head_attention(x, wq, wk, wv, wo, bo, num_heads=H)
        out = jax.block_until_ready(out)

        ref = reference_mha(x, wq, wk, wv, wo, bo, H)
        assert out.shape == (B, T, D_OUT)
        max_err = float(jnp.max(jnp.abs(out - ref)))
        # bf16 matmul operands with f32 accumulation vs f32 reference.
        assert jnp.allclose(out, ref, atol=3e-2, rtol=3e-2), f"max err {max_err}"

    print("KERNEL_OK")
</pallas_src>

<mosaic_0001>
module attributes {stable_mosaic.version = 11 : i64} {
  func.func @_qkv_proj_kernel(%arg0: i32, %arg1: i32, %arg2: memref<1x128x128xbf16, #tpu.memory_space<vmem>>, %arg3: memref<192x128xbf16, #tpu.memory_space<vmem>>, %arg4: memref<1x192x128xbf16, #tpu.memory_space<vmem>>) attributes {dimension_semantics = [#tpu.dimension_semantics<parallel>, #tpu.dimension_semantics<parallel>], iteration_bounds = array<i64: 2, 1>, scalar_prefetch = 0 : i64, scratch_operands = 0 : i64, tpu.core_type = #tpu.core_type<tc>, window_params = [{transform_indices = @transform_0, window_bounds = array<i64: 1, 128, 128>}, {pipeline_mode = #tpu.pipeline_mode<synchronous>, transform_indices = @transform_1, window_bounds = array<i64: 192, 128>}, {transform_indices = @transform_2, window_bounds = array<i64: 1, 192, 128>}]} {
    %c0 = arith.constant 0 : index
    %c0_0 = arith.constant 0 : index
    %0 = vector.load %arg3[%c0, %c0_0] : memref<192x128xbf16, #tpu.memory_space<vmem>>, vector<192x128xbf16>
    %c0_1 = arith.constant 0 : index
    %c0_2 = arith.constant 0 : index
    %c0_3 = arith.constant 0 : index
    %1 = vector.load %arg2[%c0_1, %c0_2, %c0_3] : memref<1x128x128xbf16, #tpu.memory_space<vmem>>, vector<1x128x128xbf16>
    %2 = vector.shape_cast %1 : vector<1x128x128xbf16> to vector<128x128xbf16>
    %cst = arith.constant dense<0.000000e+00> : vector<192x128xf32>
    %3 = tpu.matmul %0, %2, %cst {dimension_numbers = #tpu.dot_dimension_numbers<[1], [0], [0], [1], [0, 0, 1, 1], [], []>} : vector<192x128xbf16>, vector<128x128xbf16>, vector<192x128xf32> -> vector<192x128xf32>
    %4 = arith.truncf %3 : vector<192x128xf32> to vector<192x128xbf16>
    %c0_4 = arith.constant 0 : index
    %c0_5 = arith.constant 0 : index
    %c0_6 = arith.constant 0 : index
    %5 = vector.load %arg4[%c0_4, %c0_5, %c0_6] : memref<1x192x128xbf16, #tpu.memory_space<vmem>>, vector<1x192x128xbf16>
    %6 = vector.shape_cast %5 : vector<1x192x128xbf16> to vector<192x128xbf16>
    %7 = vector.shape_cast %4 : vector<192x128xbf16> to vector<1x192x128xbf16>
    tpu.vector_store %arg4[%c0_4, %c0_5, %c0_6], %7 {strides = array<i32>} : memref<1x192x128xbf16, #tpu.memory_space<vmem>>, vector<1x192x128xbf16>,
    return
  }
  func.func @transform_0(%arg0: i32, %arg1: i32) -> (i32, i32, i32) {
    %c0_i32 = arith.constant 0 : i32
    %c0_i32_0 = arith.constant 0 : i32
    return %arg0, %c0_i32, %arg1 : i32, i32, i32
  }
  func.func @transform_1(%arg0: i32, %arg1: i32) -> (i32, i32) {
    %c0_i32 = arith.constant 0 : i32
    %c0_i32_0 = arith.constant 0 : i32
    %c0_i32_1 = arith.constant 0 : i32
    return %c0_i32, %c0_i32_0 : i32, i32
  }
  func.func @transform_2(%arg0: i32, %arg1: i32) -> (i32, i32, i32) {
    %c0_i32 = arith.constant 0 : i32
    %c0_i32_0 = arith.constant 0 : i32
    return %arg0, %c0_i32, %arg1 : i32, i32, i32
  }
}

module attributes {stable_mosaic.version = 11 : i64} {
  func.func @_qkv_proj_kernel(%arg0: i32, %arg1: i32, %arg2: memref<1x128x128xbf16, #tpu.memory_space<vmem>>, %arg3: memref<192x128xbf16, #tpu.memory_space<vmem>>, %arg4: memref<1x192x128xbf16, #tpu.memory_space<vmem>>) attributes {dimension_semantics = [#tpu.dimension_semantics<parallel>, #tpu.dimension_semantics<parallel>], iteration_bounds = array<i64: 2, 1>, scalar_prefetch = 0 : i64, scratch_operands = 0 : i64, tpu.core_type = #tpu.core_type<tc>, window_params = [{transform_indices = @transform_0, window_bounds = array<i64: 1, 128, 128>}, {pipeline_mode = #tpu.pipeline_mode<synchronous>, transform_indices = @transform_1, window_bounds = array<i64: 192, 128>}, {transform_indices = @transform_2, window_bounds = array<i64: 1, 192, 128>}]} {
    %c0 = arith.constant 0 : index
    %c0_0 = arith.constant 0 : index
    %0 = vector.load %arg3[%c0, %c0_0] : memref<192x128xbf16, #tpu.memory_space<vmem>>, vector<192x128xbf16>
    %c0_1 = arith.constant 0 : index
    %c0_2 = arith.constant 0 : index
    %c0_3 = arith.constant 0 : index
    %1 = vector.load %arg2[%c0_1, %c0_2, %c0_3] : memref<1x128x128xbf16, #tpu.memory_space<vmem>>, vector<1x128x128xbf16>
    %2 = vector.shape_cast %1 : vector<1x128x128xbf16> to vector<128x128xbf16>
    %cst = arith.constant dense<0.000000e+00> : vector<192x128xf32>
    %3 = tpu.matmul %0, %2, %cst {dimension_numbers = #tpu.dot_dimension_numbers<[1], [0], [0], [1], [0, 0, 1, 1], [], []>} : vector<192x128xbf16>, vector<128x128xbf16>, vector<192x128xf32> -> vector<192x128xf32>
    %4 = arith.truncf %3 : vector<192x128xf32> to vector<192x128xbf16>
    %c0_4 = arith.constant 0 : index
    %c0_5 = arith.constant 0 : index
    %c0_6 = arith.constant 0 : index
    %5 = vector.load %arg4[%c0_4, %c0_5, %c0_6] : memref<1x192x128xbf16, #tpu.memory_space<vmem>>, vector<1x192x128xbf16>
    %6 = vector.shape_cast %5 : vector<1x192x128xbf16> to vector<192x128xbf16>
    %7 = vector.shape_cast %4 : vector<192x128xbf16> to vector<1x192x128xbf16>
    tpu.vector_store %arg4[%c0_4, %c0_5, %c0_6], %7 {strides = array<i32>} : memref<1x192x128xbf16, #tpu.memory_space<vmem>>, vector<1x192x128xbf16>,
    return
  }
  func.func @transform_0(%arg0: i32, %arg1: i32) -> (i32, i32, i32) {
    %c0_i32 = arith.constant 0 : i32
    %c0_i32_0 = arith.constant 0 : i32
    return %arg0, %c0_i32, %arg1 : i32, i32, i32
  }
  func.func @transform_1(%arg0: i32, %arg1: i32) -> (i32, i32) {
    %c0_i32 = arith.constant 0 : i32
    %c0_i32_0 = arith.constant 0 : i32
    %c0_i32_1 = arith.constant 0 : i32
    return %c0_i32, %c0_i32_0 : i32, i32
  }
  func.func @transform_2(%arg0: i32, %arg1: i32) -> (i32, i32, i32) {
    %c0_i32 = arith.constant 0 : i32
    %c0_i32_0 = arith.constant 0 : i32
    return %arg0, %c0_i32, %arg1 : i32, i32, i32
  }
}

</mosaic_0001>

<llo_original>
// kernel: tpu_custom_call.1
$region0: #{tpu_custom_call.1}
  #allocation0 [shape = 'u32[]', space=smem, size = 0x4, offset = 0x4, fixed_abs, tag = 'smem constant byte address 0x4 - core index']
  #allocation1 [shape = 'u32[144,128]{1,0:T(1,128)}', space=vmem, size = 0x12000, scoped, tag = 'internal scratch']
  %s0 = inlined_call_operand.hbm [shape: bf16[2,128,128], index: 0, kind: input, shape index: {}]
  %s1 = inlined_call_operand.hbm [shape: bf16[192,128], index: 1, kind: input, shape index: {}]
  %s2 = inlined_call_operand.hbm [shape: bf16[2,192,128], index: 2, kind: output, shape index: {}]
  %s3 = sld [smem:[#allocation0]]
  $region49: #{tpu_custom_call.1} parent=0
    _
  %s5 = ssub.s32 1, %s3
  %s6 = scalar_select 0, %s5, %s3
  $region1: #{tpu_custom_call.1} parent=0
    #allocation2 [shape = 'u8[65536]{0}', space=vmem, size = 0x10000, scoped, tag = 'input window, operand 0']
    #allocation3 [shape = 's32[2]{0}', space=sflag, size = 0x8, scoped, tag = 'scoped memory for tpu_custom_call.1']
    #allocation4 [shape = 's32[2]{0}', space=sflag, size = 0x8, scoped, tag = 'scoped memory for tpu_custom_call.1']
    #allocation5 [shape = 'u8[49152]{0}', space=vmem, size = 0xc000, scoped, tag = 'input window, operand 1, single buffered']
    #allocation6 [shape = 's32[1]{0}', space=sflag, size = 0x4, scoped, tag = 'scoped memory for tpu_custom_call.1']
    #allocation7 [shape = 'u8[98304]{0}', space=vmem, size = 0x18000, scoped, tag = 'output window, operand 0']
    %7 = vsyncpa [#allocation3], 0
    %s8 = scalar_lea.sflag [#allocation3], 1
    %9 = vsyncpa %s8, 0
    %10 = vsyncpa [#allocation6], 0
    %11 = vsyncpa [#allocation4], 0
    %s12 = scalar_lea.sflag [#allocation4], 1
    %13 = vsyncpa %s12, 0
    loop: start=0, step=1, limit=4
    $region2: #{tpu_custom_call.1} parent=1 // loop_pre_header
      _
    $region3: #{tpu_custom_call.1} parent=1 // loop_header
      %s15 = sphi 0, %s19
      %p16 = scmp.ge.s32.totalorder %s15, 4
      %s22 = sphi 0, %s34
      %s23 = sphi 0, %s30
      %s24 = sphi 0, %s22
      %s25 = sphi 0, %s23
      %s26 = sphi 0, %s24
      %s27 = sphi 0, %s25
      %s39 = sphi 0, %s41
      %s42 = sphi 0, %s39
      %s43 = sphi 0, %s42
      %s59 = sphi 0, %s43
      %s63 = sphi 0, %s63
      %s65 = sphi 0, %s63
      %s66 = sphi 0, %s65
      %s80 = sphi 0, %s66
      %s88 = sphi 0, %s90
      %s91 = sphi 0, %s88
      %s92 = sphi 0, %s91
      %s108 = sphi 0, %s92
    $region4: #{tpu_custom_call.1} parent=1 // loop_header_branch
      %18 = sbr.rel (%p16) target = $region8
    $region5: #{tpu_custom_call.1} parent=1 // loop_body
      %s20 = ssub.s32 %s15, 1
      %s21 = ssub.s32 %s15, 2
      %s28 = sadd.s32 1, %s23
      %p29 = scmp.ge.s32.totalorder %s28, 1
      %s30 = scalar_select %p29, 0, %s28
      %s31 = sadd.s32 1, %s22
      %s32 = scalar_select %p29, %s31, %s22
      %p33 = scmp.ge.s32.totalorder %s32, 2
      %s34 = scalar_select %p33, 0, %s32
      %s35 = ssub.s32 %s22, %s34
      %s36 = ssub.s32 %s23, %s30
      %s37 = sor.u32 %s35, %s36
      %p38 = scmp.eq.s32.totalorder %s37, 0
      %s40 = sadd.s32 %s39, 1
      %s41 = scalar_select %p38, %s39, %s40
      %p44 = pneg %p38
      %p45 = scmp.eq.s32.totalorder %s15, 1
      %p46 = por %p44, %p45
      %p47 = scmp.ne.s32.totalorder %s39, %s42
      %p48 = scmp.eq.s32.totalorder %s15, 0
      %p49 = por %p47, %p48
      %p50 = scmp.ne.s32.totalorder %s39, %s42
      %p51 = scmp.eq.s32.totalorder %s20, 1
      %p52 = por %p50, %p51
      %p53 = scmp.ne.s32.totalorder %s42, %s43
      %p54 = scmp.eq.s32.totalorder %s20, 0
      %p55 = por %p53, %p54
      %p56 = scmp.ne.s32.totalorder %s42, %s43
      %p57 = scmp.eq.s32.totalorder %s21, 1
      %p58 = por %p56, %p57
      %p60 = scmp.ne.s32.totalorder %s43, %s59
      %p61 = scmp.eq.s32.totalorder %s21, 0
      %p62 = por %p60, %p61
      %s64 = sadd.s32 %s63, 1
      %p67 = scmp.eq.s32.totalorder %s15, 1
      %p68 = scmp.ne.s32.totalorder %s63, %s65
      %p69 = scmp.eq.s32.totalorder %s15, 0
      %p70 = por %p68, %p69
      %p71 = scmp.ne.s32.totalorder %s63, %s65
      %p72 = scmp.eq.s32.totalorder %s20, 1
      %p73 = por %p71, %p72
      %p74 = scmp.ne.s32.totalorder %s65, %s66
      %p75 = scmp.eq.s32.totalorder %s20, 0
      %p76 = por %p74, %p75
      %p77 = scmp.ne.s32.totalorder %s65, %s66
      %p78 = scmp.eq.s32.totalorder %s21, 1
      %p79 = por %p77, %p78
      %p81 = scmp.ne.s32.totalorder %s66, %s80
      %p82 = scmp.eq.s32.totalorder %s21, 0
      %p83 = por %p81, %p82
      %s84 = ssub.s32 %s22, %s34
      %s85 = ssub.s32 %s23, %s30
      %s86 = sor.u32 %s84, %s85
      %p87 = scmp.eq.s32.totalorder %s86, 0
      %s89 = sadd.s32 %s88, 1
      %s90 = scalar_select %p87, %s88, %s89
      %p93 = pneg %p87
      %p94 = scmp.eq.s32.totalorder %s15, 1
      %p95 = por %p93, %p94
      %p96 = scmp.ne.s32.totalorder %s88, %s91
      %p97 = scmp.eq.s32.totalorder %s15, 0
      %p98 = por %p96, %p97
      %p99 = scmp.ne.s32.totalorder %s88, %s91
      %p100 = scmp.eq.s32.totalorder %s20, 1
      %p101 = por %p99, %p100
      %p102 = scmp.ne.s32.totalorder %s91, %s92
      %p103 = scmp.eq.s32.totalorder %s20, 0
      %p104 = por %p102, %p103
      %p105 = scmp.ne.s32.totalorder %s91, %s92
      %p106 = scmp.eq.s32.totalorder %s21, 1
      %p107 = por %p105, %p106
      %p109 = scmp.ne.s32.totalorder %s92, %s108
      %p110 = scmp.eq.s32.totalorder %s21, 0
      %p111 = por %p109, %p110
      %p112 = scmp.le.s32.totalorder 1, %s15
      %p113 = scmp.lt.s32.totalorder %s15, 3
      %p114 = pnand %p112, %p113
      %p115 = pneg %p114
      // Predicated region
      $region9: #{tpu_custom_call.1} parent=5 // pred_check
        _
      $region10: #{tpu_custom_call.1} parent=5 // pred_check_branch
        %117 = sbr.rel (%p114) target = $region12
      $region11: #{tpu_custom_call.1} parent=5 // pred_region
        %s118 = ssub.s32 %s15, 1
        // Predicated region
        $region13: #{tpu_custom_call.1} parent=11 // pred_check
          %p119 = pneg %p76
        $region14: #{tpu_custom_call.1} parent=11 // pred_check_branch
          %121 = sbr.rel (%p119) target = $region16
        $region15: #{tpu_custom_call.1} parent=11 // pred_region
          %s123 = ssub.s32 1536, 1536
          %124 = vsyncadd [#allocation6], %s123
          %s125 = sshll.u32 [#allocation5], 4
          %s126 = int_to_ptr.vmem [resolvable:$true] %s125
          %131 = dma.hbm_to_vmem [thread:$0]  %s1, 1536, %s126, [#allocation6], 64, 64, 4
        $region16: #{tpu_custom_call.1} parent=11 // pred_fallthru
          _
      $region12: #{tpu_custom_call.1} parent=5 // pred_fallthru
        _
      %p132 = scmp.lt.s32.totalorder %s15, 2
      // Predicated region
      $region17: #{tpu_custom_call.1} parent=5 // pred_check
        %p133 = pneg %p132
      $region18: #{tpu_custom_call.1} parent=5 // pred_check_branch
        %135 = sbr.rel (%p133) target = $region20
      $region19: #{tpu_custom_call.1} parent=5 // pred_region
        // Predicated region
        $region21: #{tpu_custom_call.1} parent=19 // pred_check
          %p136 = pneg %p49
        $region22: #{tpu_custom_call.1} parent=19 // pred_check_branch
          %138 = sbr.rel (%p136) target = $region24
        $region23: #{tpu_custom_call.1} parent=19 // pred_region
          %s139 = sand.u32 %s39, 1
          %s140 = scalar_lea.sflag [#allocation3], %s139
          %s141 = sand.u32 %s39, 1
          %s142 = smul.addr %s141, 64
          %s143 = scalar_lea.vmem [#allocation2], %s142
          %s145 = ssub.s32 1024, 1024
          %146 = vsyncadd %s140, %s145
          %s147 = smul.addr %s22, 16
          %s148 = sadd.s32 %s23, %s147
          %s149 = smul.addr %s148, 64
          %s150 = scalar_lea.hbm %s0, %s149
          %s151 = sshll.u32 %s143, 4
          %s152 = int_to_ptr.vmem [resolvable:$true] %s151
          %157 = dma.hbm_to_vmem [thread:$0]  %s150, 1024, %s152, %s140, 64, 64, 4
        $region24: #{tpu_custom_call.1} parent=19 // pred_fallthru
          _
      $region20: #{tpu_custom_call.1} parent=5 // pred_fallthru
        _
      %p158 = scmp.le.s32.totalorder 1, %s15
      %p159 = scmp.lt.s32.totalorder %s15, 3
      %p160 = pnand %p158, %p159
      %p161 = pneg %p160
      // Predicated region
      $region25: #{tpu_custom_call.1} parent=5 // pred_check
        _
      $region26: #{tpu_custom_call.1} parent=5 // pred_check_branch
        %163 = sbr.rel (%p160) target = $region28
      $region27: #{tpu_custom_call.1} parent=5 // pred_region
        %s164 = ssub.s32 %s15, 1
        %s165 = sand.u32 %s42, 1
        %s166 = scalar_lea.sflag [#allocation3], %s165
        %s167 = sand.u32 %s42, 1
        %s168 = smul.addr %s167, 64
        %s169 = scalar_lea.vmem [#allocation2], %s168
        // Predicated region
        $region29: #{tpu_custom_call.1} parent=27 // pred_check
          %p170 = pneg %p55
        $region30: #{tpu_custom_call.1} parent=27 // pred_check_branch
          %172 = sbr.rel (%p170) target = $region32
        $region31: #{tpu_custom_call.1} parent=27 // pred_region
          %173 = dma.done %s166, 1024
        $region32: #{tpu_custom_call.1} parent=27 // pred_fallthru
          _
        // Predicated region
        $region33: #{tpu_custom_call.1} parent=27 // pred_check
          %p174 = pneg %p76
        $region34: #{tpu_custom_call.1} parent=27 // pred_check_branch
          %176 = sbr.rel (%p174) target = $region36
        $region35: #{tpu_custom_call.1} parent=27 // pred_region
          %177 = dma.done [#allocation6], 1536
        $region36: #{tpu_custom_call.1} parent=27 // pred_fallthru
          _
        %s178 = sand.u32 %s42, 1
        %s179 = scalar_lea.sflag [#allocation3], %s178
        %s180 = sand.u32 %s42, 1
        %s181 = smul.addr %s180, 64
        %s182 = scalar_lea.vmem [#allocation2], %s181
        %p183 = pneg %p55
        %p184 = pneg %p52
        %p185 = pneg %p76
        %p186 = pneg %p73
        %p187 = pneg %p104
        %p188 = pneg %p101
        %s189 = sand.u32 %s91, 1
        %s190 = scalar_lea.sflag [#allocation4], %s189
        %s191 = sand.u32 %s91, 1
        %s192 = smul.addr %s191, 96
        %s193 = scalar_lea.vmem [#allocation7], %s192
        %v195 = vld [vmem:[#allocation5] sm:$0xf]
        %v196 = vld [vmem:[#allocation5 + $0x4] sm:$0xf]
        %v197 = vld [vmem:[#allocation5 + $0x8] sm:$0xf]
        %v198 = vld [vmem:[#allocation5 + $0xc] sm:$0xf]
        %v199 = vld [vmem:[#allocation5 + $0x10] sm:$0xf]
        %v200 = vld [vmem:[#allocation5 + $0x14] sm:$0xf]
        %v201 = vld [vmem:[#allocation5 + $0x18] sm:$0xf]
        %v202 = vld [vmem:[#allocation5 + $0x1c] sm:$0xf]
        %v203 = vld [vmem:[#allocation5 + $0x20] sm:$0xf]
        %v204 = vld [vmem:[#allocation5 + $0x24] sm:$0xf]
        %v205 = vld [vmem:[#allocation5 + $0x28] sm:$0xf]
        %v206 = vld [vmem:[#allocation5 + $0x2c] sm:$0xf]
        %v207 = vld [vmem:[#allocation5 + $0x30] sm:$0xf]
        %v208 = vld [vmem:[#allocation5 + $0x34] sm:$0xf]
        %v209 = vld [vmem:[#allocation5 + $0x38] sm:$0xf]
        %v210 = vld [vmem:[#allocation5 + $0x3c] sm:$0xf]
        %v211 = vld [vmem:[#allocation5 + $0x40] sm:$0xf]
        %v212 = vld [vmem:[#allocation5 + $0x44] sm:$0xf]
        %v213 = vld [vmem:[#allocation5 + $0x48] sm:$0xf]
        %v214 = vld [vmem:[#allocation5 + $0x4c] sm:$0xf]
        %v215 = vld [vmem:[#allocation5 + $0x50] sm:$0xf]
        %v216 = vld [vmem:[#allocation5 + $0x54] sm:$0xf]
        %v217 = vld [vmem:[#allocation5 + $0x58] sm:$0xf]
        %v218 = vld [vmem:[#allocation5 + $0x5c] sm:$0xf]
        %v219 = vld [vmem:[%s169] sm:$0xf]
        %v220 = vld [vmem:[%s169 + $0x4] sm:$0xf]
        %v221 = vld [vmem:[%s169 + $0x8] sm:$0xf]
        %v222 = vld [vmem:[%s169 + $0xc] sm:$0xf]
        %v223 = vld [vmem:[%s169 + $0x10] sm:$0xf]
        %v224 = vld [vmem:[%s169 + $0x14] sm:$0xf]
        %v225 = vld [vmem:[%s169 + $0x18] sm:$0xf]
        %v226 = vld [vmem:[%s169 + $0x1c] sm:$0xf]
        %v227 = vld [vmem:[%s169 + $0x20] sm:$0xf]
        %v228 = vld [vmem:[%s169 + $0x24] sm:$0xf]
        %v229 = vld [vmem:[%s169 + $0x28] sm:$0xf]
        %v230 = vld [vmem:[%s169 + $0x2c] sm:$0xf]
        %v231 = vld [vmem:[%s169 + $0x30] sm:$0xf]
        %v232 = vld [vmem:[%s169 + $0x34] sm:$0xf]
        %v233 = vld [vmem:[%s169 + $0x38] sm:$0xf]
        %v234 = vld [vmem:[%s169 + $0x3c] sm:$0xf]
        %v259 = vunpack.c.l.b16 %v195
        %v260 = vunpack.c.l.b16 %v196
        %v261 = vunpack.c.l.b16 %v197
        %v262 = vunpack.c.l.b16 %v198
        %v263 = vunpack.c.l.b16 %v199
        %v264 = vunpack.c.l.b16 %v200
        %v265 = vunpack.c.l.b16 %v201
        %v266 = vunpack.c.l.b16 %v202
        %v267 = vunpack.c.l.b16 %v203
        %v268 = vunpack.c.l.b16 %v204
        %v269 = vunpack.c.l.b16 %v205
        %v270 = vunpack.c.l.b16 %v206
        %v271 = vunpack.c.l.b16 %v207
        %v272 = vunpack.c.l.b16 %v208
        %v273 = vunpack.c.l.b16 %v209
        %v274 = vunpack.c.l.b16 %v210
        %v275 = vunpack.c.l.b16 %v211
        %v276 = vunpack.c.l.b16 %v212
        %v277 = vunpack.c.l.b16 %v213
        %v278 = vunpack.c.l.b16 %v214
        %v279 = vunpack.c.l.b16 %v215
        %v280 = vunpack.c.l.b16 %v216
        %v281 = vunpack.c.l.b16 %v217
        %v282 = vunpack.c.l.b16 %v218
        %v283 = vpack.c.b16 %v260, %v259
        %v284 = vpack.c.b16 %v262, %v261
        %v285 = vpack.c.b16 %v264, %v263
        %v286 = vpack.c.b16 %v266, %v265
        %v287 = vpack.c.b16 %v268, %v267
        %v288 = vpack.c.b16 %v270, %v269
        %v289 = vpack.c.b16 %v272, %v271
        %v290 = vpack.c.b16 %v274, %v273
        %v291 = vpack.c.b16 %v276, %v275
        %v292 = vpack.c.b16 %v278, %v277
        %v293 = vpack.c.b16 %v280, %v279
        %v294 = vpack.c.b16 %v282, %v281
        %v323 = vunpack.c.l.b16 %v219
        %v324 = vunpack.c.l.b16 %v220
        %v325 = vunpack.c.l.b16 %v221
        %v326 = vunpack.c.l.b16 %v222
        %v327 = vunpack.c.l.b16 %v223
        %v328 = vunpack.c.l.b16 %v224
        %v329 = vunpack.c.l.b16 %v225
        %v330 = vunpack.c.l.b16 %v226
        %v331 = vunpack.c.l.b16 %v227
        %v332 = vunpack.c.l.b16 %v228
        %v333 = vunpack.c.l.b16 %v229
        %v334 = vunpack.c.l.b16 %v230
        %v335 = vunpack.c.l.b16 %v231
        %v336 = vunpack.c.l.b16 %v232
        %v337 = vunpack.c.l.b16 %v233
        %v338 = vunpack.c.l.b16 %v234
        %v339 = vpack.c.b16 %v324, %v323
        %v340 = vpack.c.b16 %v326, %v325
        %v341 = vpack.c.b16 %v328, %v327
        %v342 = vpack.c.b16 %v330, %v329
        %v343 = vpack.c.b16 %v332, %v331
        %v344 = vpack.c.b16 %v334, %v333
        %v345 = vpack.c.b16 %v336, %v335
        %v346 = vpack.c.b16 %v338, %v337
        %355 = vmatprep.subr.bf16.mxu0 0
        %356 = vmatpush1.bf16.msra.mxu0 %v339
        %357 = vmatprep.subr.bf16.mxu0 0
        %358 = vmatpush1.bf16.msra.mxu0 %v340
        %359 = vmatprep.subr.bf16.mxu0 0
        %360 = vmatpush1.bf16.msra.mxu0 %v341
        %361 = vmatprep.subr.bf16.mxu0 0
        %362 = vmatpush1.bf16.msra.mxu0 %v342
        %363 = vmatprep.subr.bf16.mxu0 0
        %364 = vmatpush1.bf16.msra.mxu0 %v343
        %365 = vmatprep.subr.bf16.mxu0 0
        %366 = vmatpush1.bf16.msra.mxu0 %v344
        %367 = vmatprep.subr.bf16.mxu0 0
        %368 = vmatpush1.bf16.msra.mxu0 %v345
        %369 = vmatprep.subr.bf16.mxu0 0
        %370 = vmatpush1.bf16.msra.mxu0 %v346
        %371 = vmatprep.subr.bf16.mxu0 0
        %372 = vmatpush1.bf16.msra.mxu0 0
        %373 = vmatprep.subr.bf16.mxu0 0
        %374 = vmatpush1.bf16.msra.mxu0 0
        %375 = vmatprep.subr.bf16.mxu0 0
        %376 = vmatpush1.bf16.msra.mxu0 0
        %377 = vmatprep.subr.bf16.mxu0 0
        %378 = vmatpush1.bf16.msra.mxu0 0
        %379 = vmatprep.subr.bf16.mxu0 0
        %380 = vmatpush1.bf16.msra.mxu0 0
        %381 = vmatprep.subr.bf16.mxu0 0
        %382 = vmatpush1.bf16.msra.mxu0 0
        %383 = vmatprep.subr.bf16.mxu0 0
        %384 = vmatpush1.bf16.msra.mxu0 0
        %385 = vmatprep.subr.bf16.mxu0 0
        %386 = vmatpush1.bf16.msra.mxu0 0
        %387 = vmatprep.mubr.bf16.mxu0 0
        %388 = vmatmul.mubr.bf16.gmra.mrb[0].mxu0 %v283
        %v389 = vpop.f32.mrb[0].mxu0
        %v390 = vadd.f32 0.0, %v389
        %v391 = vpop.f32.mrb[0].mxu0
        %v392 = vpop.f32.mrb[0].mxu0
        %v393 = vadd.f32 0.0, %v392
        %v394 = vpop.f32.mrb[0].mxu0
        %395 = vmatprep.mubr.bf16.mxu0 0
        %396 = vmatmul.mubr.bf16.gmra.mrb[0].mxu0 %v284
        %v397 = vpop.f32.mrb[0].mxu0
        %v398 = vadd.f32 0.0, %v397
        %v399 = vpop.f32.mrb[0].mxu0
        %v400 = vpop.f32.mrb[0].mxu0
        %v401 = vadd.f32 0.0, %v400
        %v402 = vpop.f32.mrb[0].mxu0
        %403 = vmatprep.mubr.bf16.mxu0 0
        %404 = vmatmul.mubr.bf16.gmra.mrb[0].mxu0 %v285
        %v405 = vpop.f32.mrb[0].mxu0
        %v406 = vadd.f32 0.0, %v405
        %v407 = vpop.f32.mrb[0].mxu0
        %v408 = vpop.f32.mrb[0].mxu0
        %v409 = vadd.f32 0.0, %v408
        %v410 = vpop.f32.mrb[0].mxu0
        %411 = vmatprep.mubr.bf16.mxu0 0
        %412 = vmatmul.mubr.bf16.gmra.mrb[0].mxu0 %v286
        %v413 = vpop.f32.mrb[0].mxu0
        %v414 = vadd.f32 0.0, %v413
        %v415 = vpop.f32.mrb[0].mxu0
        %v416 = vpop.f32.mrb[0].mxu0
        %v417 = vadd.f32 0.0, %v416
        %v418 = vpop.f32.mrb[0].mxu0
        %419 = vmatprep.mubr.bf16.mxu0 0
        %420 = vmatmul.mubr.bf16.gmra.mrb[0].mxu0 %v287
        %v421 = vpop.f32.mrb[0].mxu0
        %v422 = vadd.f32 0.0, %v421
        %v423 = vpop.f32.mrb[0].mxu0
        %v424 = vpop.f32.mrb[0].mxu0
        %v425 = vadd.f32 0.0, %v424
        %v426 = vpop.f32.mrb[0].mxu0
        %427 = vmatprep.mubr.bf16.mxu0 0
        %428 = vmatmul.mubr.bf16.gmra.mrb[0].mxu0 %v288
        %v429 = vpop.f32.mrb[0].mxu0
        %v430 = vadd.f32 0.0, %v429
        %v431 = vpop.f32.mrb[0].mxu0
        %v432 = vpop.f32.mrb[0].mxu0
        %v433 = vadd.f32 0.0, %v432
        %v434 = vpop.f32.mrb[0].mxu0
        %435 = vmatprep.mubr.bf16.mxu0 0
        %436 = vmatmul.mubr.bf16.gmra.mrb[0].mxu0 %v289
        %v437 = vpop.f32.mrb[0].mxu0
        %v438 = vadd.f32 0.0, %v437
        %v439 = vpop.f32.mrb[0].mxu0
        %v440 = vpop.f32.mrb[0].mxu0
        %v441 = vadd.f32 0.0, %v440
        %v442 = vpop.f32.mrb[0].mxu0
        %443 = vmatprep.mubr.bf16.mxu0 0
        %444 = vmatmul.mubr.bf16.gmra.mrb[0].mxu0 %v290
        %v445 = vpop.f32.mrb[0].mxu0
        %v446 = vadd.f32 0.0, %v445
        %v447 = vpop.f32.mrb[0].mxu0
        %v448 = vpop.f32.mrb[0].mxu0
        %v449 = vadd.f32 0.0, %v448
        %v450 = vpop.f32.mrb[0].mxu0
        %451 = vmatprep.mubr.bf16.mxu0 0
        %452 = vmatmul.mubr.bf16.gmra.mrb[0].mxu0 %v291
        %v453 = vpop.f32.mrb[0].mxu0
        %v454 = vadd.f32 0.0, %v453
        %v455 = vpop.f32.mrb[0].mxu0
        %v456 = vpop.f32.mrb[0].mxu0
        %v457 = vadd.f32 0.0, %v456
        %v458 = vpop.f32.mrb[0].mxu0
        %459 = vmatprep.mubr.bf16.mxu0 0
        %460 = vmatmul.mubr.bf16.gmra.mrb[0].mxu0 %v292
        %v461 = vpop.f32.mrb[0].mxu0
        %v462 = vadd.f32 0.0, %v461
        %v463 = vpop.f32.mrb[0].mxu0
        %v464 = vpop.f32.mrb[0].mxu0
        %v465 = vadd.f32 0.0, %v464
        %v466 = vpop.f32.mrb[0].mxu0
        %467 = vmatprep.mubr.bf16.mxu0 0
        %468 = vmatmul.mubr.bf16.gmra.mrb[0].mxu0 %v293
        %v469 = vpop.f32.mrb[0].mxu0
        %v470 = vadd.f32 0.0, %v469
        %v471 = vpop.f32.mrb[0].mxu0
        %v472 = vpop.f32.mrb[0].mxu0
        %v473 = vadd.f32 0.0, %v472
        %v474 = vpop.f32.mrb[0].mxu0
        %475 = vmatprep.mubr.bf16.mxu0 0
        %476 = vmatmul.mubr.bf16.gmra.mrb[0].mxu0 %v294
        %v477 = vpop.f32.mrb[0].mxu0
        %v478 = vadd.f32 0.0, %v477
        %v479 = vpop.f32.mrb[0].mxu0
        %v480 = vpop.f32.mrb[0].mxu0
        %v481 = vadd.f32 0.0, %v480
        %v482 = vpop.f32.mrb[0].mxu0
        %483 = vdwg.mxu0
        %v484 = vpack.c.bf16 %v393, %v390
        %v485 = vpack.c.bf16 %v401, %v398
        %v486 = vpack.c.bf16 %v409, %v406
        %v487 = vpack.c.bf16 %v417, %v414
        %v488 = vpack.c.bf16 %v425, %v422
        %v489 = vpack.c.bf16 %v433, %v430
        %v490 = vpack.c.bf16 %v441, %v438
        %v491 = vpack.c.bf16 %v449, %v446
        %v492 = vpack.c.bf16 %v457, %v454
        %v493 = vpack.c.bf16 %v465, %v462
        %v494 = vpack.c.bf16 %v473, %v470
        %v495 = vpack.c.bf16 %v481, %v478
        %v508 = vunpack.c.l.b16 %v484
        %v509 = vunpack.c.h.b16 %v484
        %v510 = vunpack.c.l.b16 %v485
        %v511 = vunpack.c.h.b16 %v485
        %v512 = vunpack.c.l.b16 %v486
        %v513 = vunpack.c.h.b16 %v486
        %v514 = vunpack.c.l.b16 %v487
        %v515 = vunpack.c.h.b16 %v487
        %v516 = vunpack.c.l.b16 %v488
        %v517 = vunpack.c.h.b16 %v488
        %v518 = vunpack.c.l.b16 %v489
        %v519 = vunpack.c.h.b16 %v489
        %v520 = vunpack.c.l.b16 %v490
        %v521 = vunpack.c.h.b16 %v490
        %v522 = vunpack.c.l.b16 %v491
        %v523 = vunpack.c.h.b16 %v491
        %v524 = vunpack.c.l.b16 %v492
        %v525 = vunpack.c.h.b16 %v492
        %v526 = vunpack.c.l.b16 %v493
        %v527 = vunpack.c.h.b16 %v493
        %v528 = vunpack.c.l.b16 %v494
        %v529 = vunpack.c.h.b16 %v494
        %v530 = vunpack.c.l.b16 %v495
        %v531 = vunpack.c.h.b16 %v495
        %v532 = vpack.c.b16 %v508, %v508
        %v533 = vpack.c.b16 %v509, %v509
        %v534 = vpack.c.b16 %v510, %v510
        %v535 = vpack.c.b16 %v511, %v511
        %v536 = vpack.c.b16 %v512, %v512
        %v537 = vpack.c.b16 %v513, %v513
        %v538 = vpack.c.b16 %v514, %v514
        %v539 = vpack.c.b16 %v515, %v515
        %v540 = vpack.c.b16 %v516, %v516
        %v541 = vpack.c.b16 %v517, %v517
        %v542 = vpack.c.b16 %v518, %v518
        %v543 = vpack.c.b16 %v519, %v519
        %v544 = vpack.c.b16 %v520, %v520
        %v545 = vpack.c.b16 %v521, %v521
        %v546 = vpack.c.b16 %v522, %v522
        %v547 = vpack.c.b16 %v523, %v523
        %v548 = vpack.c.b16 %v524, %v524
        %v549 = vpack.c.b16 %v525, %v525
        %v550 = vpack.c.b16 %v526, %v526
        %v551 = vpack.c.b16 %v527, %v527
        %v552 = vpack.c.b16 %v528, %v528
        %v553 = vpack.c.b16 %v529, %v529
        %v554 = vpack.c.b16 %v530, %v530
        %v555 = vpack.c.b16 %v531, %v531
        %580 = vst [vmem:[%s193] sm:$0xf] %v532
        %581 = vst [vmem:[%s193 + $0x4] sm:$0xf] %v533
        %582 = vst [vmem:[%s193 + $0x8] sm:$0xf] %v534
        %583 = vst [vmem:[%s193 + $0xc] sm:$0xf] %v535
        %584 = vst [vmem:[%s193 + $0x10] sm:$0xf] %v536
        %585 = vst [vmem:[%s193 + $0x14] sm:$0xf] %v537
        %586 = vst [vmem:[%s193 + $0x18] sm:$0xf] %v538
        %587 = vst [vmem:[%s193 + $0x1c] sm:$0xf] %v539
        %588 = vst [vmem:[%s193 + $0x20] sm:$0xf] %v540
        %589 = vst [vmem:[%s193 + $0x24] sm:$0xf] %v541
        %590 = vst [vmem:[%s193 + $0x28] sm:$0xf] %v542
        %591 = vst [vmem:[%s193 + $0x2c] sm:$0xf] %v543
        %592 = vst [vmem:[%s193 + $0x30] sm:$0xf] %v544
        %593 = vst [vmem:[%s193 + $0x34] sm:$0xf] %v545
        %594 = vst [vmem:[%s193 + $0x38] sm:$0xf] %v546
        %595 = vst [vmem:[%s193 + $0x3c] sm:$0xf] %v547
        %596 = vst [vmem:[%s193 + $0x40] sm:$0xf] %v548
        %597 = vst [vmem:[%s193 + $0x44] sm:$0xf] %v549
        %598 = vst [vmem:[%s193 + $0x48] sm:$0xf] %v550
        %599 = vst [vmem:[%s193 + $0x4c] sm:$0xf] %v551
        %600 = vst [vmem:[%s193 + $0x50] sm:$0xf] %v552
        %601 = vst [vmem:[%s193 + $0x54] sm:$0xf] %v553
        %602 = vst [vmem:[%s193 + $0x58] sm:$0xf] %v554
        %603 = vst [vmem:[%s193 + $0x5c] sm:$0xf] %v555
        %s604 = sand.u32 %s91, 1
        %s605 = scalar_lea.sflag [#allocation4], %s604
        %s606 = sand.u32 %s91, 1
        %s607 = smul.addr %s606, 96
        %s608 = scalar_lea.vmem [#allocation7], %s607
        // Predicated region
        $region37: #{tpu_custom_call.1} parent=27 // pred_check
          %p609 = pneg %p101
        $region38: #{tpu_custom_call.1} parent=27 // pred_check_branch
          %611 = sbr.rel (%p609) target = $region40
        $region39: #{tpu_custom_call.1} parent=27 // pred_region
          %s613 = ssub.s32 1536, 1536
          %614 = vsyncadd %s605, %s613
          %s615 = smul.addr %s24, 24
          %s616 = sadd.s32 %s25, %s615
          %s617 = smul.addr %s616, 64
          %s618 = scalar_lea.hbm %s2, %s617
          %s619 = sshll.u32 %s608, 4
          %s620 = int_to_ptr.vmem [resolvable:$true] %s619
          %625 = dma.vmem_to_hbm [thread:$0]  %s620, 1536, %s618, %s605, 64, 64, 4
        $region40: #{tpu_custom_call.1} parent=27 // pred_fallthru
          _
      $region28: #{tpu_custom_call.1} parent=5 // pred_fallthru
        _
      %p626 = scmp.le.s32.totalorder 2, %s15
      // Predicated region
      $region41: #{tpu_custom_call.1} parent=5 // pred_check
        %p627 = pneg %p626
      $region42: #{tpu_custom_call.1} parent=5 // pred_check_branch
        %629 = sbr.rel (%p627) target = $region44
      $region43: #{tpu_custom_call.1} parent=5 // pred_region
        %s630 = ssub.s32 %s15, 2
        // Predicated region
        $region45: #{tpu_custom_call.1} parent=43 // pred_check
          %p631 = pneg %p107
        $region46: #{tpu_custom_call.1} parent=43 // pred_check_branch
          %633 = sbr.rel (%p631) target = $region48
        $region47: #{tpu_custom_call.1} parent=43 // pred_region
          %s634 = sand.u32 %s92, 1
          %s635 = scalar_lea.sflag [#allocation4], %s634
          %s636 = sand.u32 %s92, 1
          %s637 = smul.addr %s636, 96
          %s638 = scalar_lea.vmem [#allocation7], %s637
          %639 = dma.done %s635, 1536
        $region48: #{tpu_custom_call.1} parent=43 // pred_fallthru
          _
      $region44: #{tpu_custom_call.1} parent=5 // pred_fallthru
        _
    $region6: #{tpu_custom_call.1} parent=1 // loop_footer
      %s19 = sadd.s32 1, %s15
    $region7: #{tpu_custom_call.1} parent=1 // loop_footer_branch
      %14 = sbr.rel target = $region3
    $region8: #{tpu_custom_call.1} parent=1 // loop_exit
      _
    %640 = vsyncpa [#allocation3], 1
    %s641 = scalar_lea.sflag [#allocation3], 1
    %642 = vsyncpa %s641, 1
    %643 = vsyncpa [#allocation6], 1
    %644 = vsyncpa [#allocation4], 1
    %s645 = scalar_lea.sflag [#allocation4], 1
    %646 = vsyncpa %s645, 1

// kernel: tpu_custom_call.1
$region0: #{tpu_custom_call.1}
  #allocation0 [shape = 'u32[]', space=smem, size = 0x4, offset = 0x4, fixed_abs, tag = 'smem constant byte address 0x4 - core index']
  #allocation1 [shape = 'u32[144,128]{1,0:T(1,128)}', space=vmem, size = 0x12000, scoped, tag = 'internal scratch']
  %s0 = inlined_call_operand.hbm [shape: bf16[2,128,128], index: 0, kind: input, shape index: {}]
  %s1 = inlined_call_operand.hbm [shape: bf16[192,128], index: 1, kind: input, shape index: {}]
  %s2 = inlined_call_operand.hbm [shape: bf16[2,192,128], index: 2, kind: output, shape index: {}]
  %s3 = sld [smem:[#allocation0]]
  $region49: #{tpu_custom_call.1} parent=0
    _
  %s5 = ssub.s32 1, %s3
  %s6 = scalar_select 0, %s5, %s3
  $region1: #{tpu_custom_call.1} parent=0
    #allocation2 [shape = 'u8[65536]{0}', space=vmem, size = 0x10000, scoped, tag = 'input window, operand 0']
    #allocation3 [shape = 's32[2]{0}', space=sflag, size = 0x8, scoped, tag = 'scoped memory for tpu_custom_call.1']
    #allocation4 [shape = 's32[2]{0}', space=sflag, size = 0x8, scoped, tag = 'scoped memory for tpu_custom_call.1']
    #allocation5 [shape = 'u8[49152]{0}', space=vmem, size = 0xc000, scoped, tag = 'input window, operand 1, single buffered']
    #allocation6 [shape = 's32[1]{0}', space=sflag, size = 0x4, scoped, tag = 'scoped memory for tpu_custom_call.1']
    #allocation7 [shape = 'u8[98304]{0}', space=vmem, size = 0x18000, scoped, tag = 'output window, operand 0']
    %7 = vsyncpa [#allocation3], 0
    %s8 = scalar_lea.sflag [#allocation3], 1
    %9 = vsyncpa %s8, 0
    %10 = vsyncpa [#allocation6], 0
    %11 = vsyncpa [#allocation4], 0
    %s12 = scalar_lea.sflag [#allocation4], 1
    %13 = vsyncpa %s12, 0
    loop: start=0, step=1, limit=4
    $region2: #{tpu_custom_call.1} parent=1 // loop_pre_header
      _
    $region3: #{tpu_custom_call.1} parent=1 // loop_header
      %s15 = sphi 0, %s19
      %p16 = scmp.ge.s32.totalorder %s15, 4
      %s22 = sphi 0, %s34
      %s23 = sphi 0, %s30
      %s24 = sphi 0, %s22
      %s25 = sphi 0, %s23
      %s26 = sphi 0, %s24
      %s27 = sphi 0, %s25
      %s39 = sphi 0, %s41
      %s42 = sphi 0, %s39
      %s43 = sphi 0, %s42
      %s59 = sphi 0, %s43
      %s63 = sphi 0, %s63
      %s65 = sphi 0, %s63
      %s66 = sphi 0, %s65
      %s80 = sphi 0, %s66
      %s88 = sphi 0, %s90
      %s91 = sphi 0, %s88
      %s92 = sphi 0, %s91
      %s108 = sphi 0, %s92
    $region4: #{tpu_custom_call.1} parent=1 // loop_header_branch
      %18 = sbr.rel (%p16) target = $region8
    $region5: #{tpu_custom_call.1} parent=1 // loop_body
      %s20 = ssub.s32 %s15, 1
      %s21 = ssub.s32 %s15, 2
      %s28 = sadd.s32 1, %s23
      %p29 = scmp.ge.s32.totalorder %s28, 1
      %s30 = scalar_select %p29, 0, %s28
      %s31 = sadd.s32 1, %s22
      %s32 = scalar_select %p29, %s31, %s22
      %p33 = scmp.ge.s32.totalorder %s32, 2
      %s34 = scalar_select %p33, 0, %s32
      %s35 = ssub.s32 %s22, %s34
      %s36 = ssub.s32 %s23, %s30
      %s37 = sor.u32 %s35, %s36
      %p38 = scmp.eq.s32.totalorder %s37, 0
      %s40 = sadd.s32 %s39, 1
      %s41 = scalar_select %p38, %s39, %s40
      %p44 = pneg %p38
      %p45 = scmp.eq.s32.totalorder %s15, 1
      %p46 = por %p44, %p45
      %p47 = scmp.ne.s32.totalorder %s39, %s42
      %p48 = scmp.eq.s32.totalorder %s15, 0
      %p49 = por %p47, %p48
      %p50 = scmp.ne.s32.totalorder %s39, %s42
      %p51 = scmp.eq.s32.totalorder %s20, 1
      %p52 = por %p50, %p51
      %p53 = scmp.ne.s32.totalorder %s42, %s43
      %p54 = scmp.eq.s32.totalorder %s20, 0
      %p55 = por %p53, %p54
      %p56 = scmp.ne.s32.totalorder %s42, %s43
      %p57 = scmp.eq.s32.totalorder %s21, 1
      %p58 = por %p56, %p57
      %p60 = scmp.ne.s32.totalorder %s43, %s59
      %p61 = scmp.eq.s32.totalorder %s21, 0
      %p62 = por %p60, %p61
      %s64 = sadd.s32 %s63, 1
      %p67 = scmp.eq.s32.totalorder %s15, 1
      %p68 = scmp.ne.s32.totalorder %s63, %s65
      %p69 = scmp.eq.s32.totalorder %s15, 0
      %p70 = por %p68, %p69
      %p71 = scmp.ne.s32.totalorder %s63, %s65
      %p72 = scmp.eq.s32.totalorder %s20, 1
      %p73 = por %p71, %p72
      %p74 = scmp.ne.s32.totalorder %s65, %s66
      %p75 = scmp.eq.s32.totalorder %s20, 0
      %p76 = por %p74, %p75
      %p77 = scmp.ne.s32.totalorder %s65, %s66
      %p78 = scmp.eq.s32.totalorder %s21, 1
      %p79 = por %p77, %p78
      %p81 = scmp.ne.s32.totalorder %s66, %s80
      %p82 = scmp.eq.s32.totalorder %s21, 0
      %p83 = por %p81, %p82
      %s84 = ssub.s32 %s22, %s34
      %s85 = ssub.s32 %s23, %s30
      %s86 = sor.u32 %s84, %s85
      %p87 = scmp.eq.s32.totalorder %s86, 0
      %s89 = sadd.s32 %s88, 1
      %s90 = scalar_select %p87, %s88, %s89
      %p93 = pneg %p87
      %p94 = scmp.eq.s32.totalorder %s15, 1
      %p95 = por %p93, %p94
      %p96 = scmp.ne.s32.totalorder %s88, %s91
      %p97 = scmp.eq.s32.totalorder %s15, 0
      %p98 = por %p96, %p97
      %p99 = scmp.ne.s32.totalorder %s88, %s91
      %p100 = scmp.eq.s32.totalorder %s20, 1
      %p101 = por %p99, %p100
      %p102 = scmp.ne.s32.totalorder %s91, %s92
      %p103 = scmp.eq.s32.totalorder %s20, 0
      %p104 = por %p102, %p103
      %p105 = scmp.ne.s32.totalorder %s91, %s92
      %p106 = scmp.eq.s32.totalorder %s21, 1
      %p107 = por %p105, %p106
      %p109 = scmp.ne.s32.totalorder %s92, %s108
      %p110 = scmp.eq.s32.totalorder %s21, 0
      %p111 = por %p109, %p110
      %p112 = scmp.le.s32.totalorder 1, %s15
      %p113 = scmp.lt.s32.totalorder %s15, 3
      %p114 = pnand %p112, %p113
      %p115 = pneg %p114
      // Predicated region
      $region9: #{tpu_custom_call.1} parent=5 // pred_check
        _
      $region10: #{tpu_custom_call.1} parent=5 // pred_check_branch
        %117 = sbr.rel (%p114) target = $region12
      $region11: #{tpu_custom_call.1} parent=5 // pred_region
        %s118 = ssub.s32 %s15, 1
        // Predicated region
        $region13: #{tpu_custom_call.1} parent=11 // pred_check
          %p119 = pneg %p76
        $region14: #{tpu_custom_call.1} parent=11 // pred_check_branch
          %121 = sbr.rel (%p119) target = $region16
        $region15: #{tpu_custom_call.1} parent=11 // pred_region
          %s123 = ssub.s32 1536, 1536
          %124 = vsyncadd [#allocation6], %s123
          %s125 = sshll.u32 [#allocation5], 4
          %s126 = int_to_ptr.vmem [resolvable:$true] %s125
          %131 = dma.hbm_to_vmem [thread:$0]  %s1, 1536, %s126, [#allocation6], 64, 64, 4
        $region16: #{tpu_custom_call.1} parent=11 // pred_fallthru
          _
      $region12: #{tpu_custom_call.1} parent=5 // pred_fallthru
        _
      %p132 = scmp.lt.s32.totalorder %s15, 2
      // Predicated region
      $region17: #{tpu_custom_call.1} parent=5 // pred_check
        %p133 = pneg %p132
      $region18: #{tpu_custom_call.1} parent=5 // pred_check_branch
        %135 = sbr.rel (%p133) target = $region20
      $region19: #{tpu_custom_call.1} parent=5 // pred_region
        // Predicated region
        $region21: #{tpu_custom_call.1} parent=19 // pred_check
          %p136 = pneg %p49
        $region22: #{tpu_custom_call.1} parent=19 // pred_check_branch
          %138 = sbr.rel (%p136) target = $region24
        $region23: #{tpu_custom_call.1} parent=19 // pred_region
          %s139 = sand.u32 %s39, 1
          %s140 = scalar_lea.sflag [#allocation3], %s139
          %s141 = sand.u32 %s39, 1
          %s142 = smul.addr %s141, 64
          %s143 = scalar_lea.vmem [#allocation2], %s142
          %s145 = ssub.s32 1024, 1024
          %146 = vsyncadd %s140, %s145
          %s147 = smul.addr %s22, 16
          %s148 = sadd.s32 %s23, %s147
          %s149 = smul.addr %s148, 64
          %s150 = scalar_lea.hbm %s0, %s149
          %s151 = sshll.u32 %s143, 4
          %s152 = int_to_ptr.vmem [resolvable:$true] %s151
          %157 = dma.hbm_to_vmem [thread:$0]  %s150, 1024, %s152, %s140, 64, 64, 4
        $region24: #{tpu_custom_call.1} parent=19 // pred_fallthru
          _
      $region20: #{tpu_custom_call.1} parent=5 // pred_fallthru
        _
      %p158 = scmp.le.s32.totalorder 1, %s15
      %p159 = scmp.lt.s32.totalorder %s15, 3
      %p160 = pnand %p158, %p159
      %p161 = pneg %p160
      // Predicated region
      $region25: #{tpu_custom_call.1} parent=5 // pred_check
        _
      $region26: #{tpu_custom_call.1} parent=5 // pred_check_branch
        %163 = sbr.rel (%p160) target = $region28
      $region27: #{tpu_custom_call.1} parent=5 // pred_region
        %s164 = ssub.s32 %s15, 1
        %s165 = sand.u32 %s42, 1
        %s166 = scalar_lea.sflag [#allocation3], %s165
        %s167 = sand.u32 %s42, 1
        %s168 = smul.addr %s167, 64
        %s169 = scalar_lea.vmem [#allocation2], %s168
        // Predicated region
        $region29: #{tpu_custom_call.1} parent=27 // pred_check
          %p170 = pneg %p55
        $region30: #{tpu_custom_call.1} parent=27 // pred_check_branch
          %172 = sbr.rel (%p170) target = $region32
        $region31: #{tpu_custom_call.1} parent=27 // pred_region
          %173 = dma.done %s166, 1024
        $region32: #{tpu_custom_call.1} parent=27 // pred_fallthru
          _
        // Predicated region
        $region33: #{tpu_custom_call.1} parent=27 // pred_check
          %p174 = pneg %p76
        $region34: #{tpu_custom_call.1} parent=27 // pred_check_branch
          %176 = sbr.rel (%p174) target = $region36
        $region35: #{tpu_custom_call.1} parent=27 // pred_region
          %177 = dma.done [#allocation6], 1536
        $region36: #{tpu_custom_call.1} parent=27 // pred_fallthru
          _
        %s178 = sand.u32 %s42, 1
        %s179 = scalar_lea.sflag [#allocation3], %s178
        %s180 = sand.u32 %s42, 1
        %s181 = smul.addr %s180, 64
        %s182 = scalar_lea.vmem [#allocation2], %s181
        %p183 = pneg %p55
        %p184 = pneg %p52
        %p185 = pneg %p76
        %p186 = pneg %p73
        %p187 = pneg %p104
        %p188 = pneg %p101
        %s189 = sand.u32 %s91, 1
        %s190 = scalar_lea.sflag [#allocation4], %s189
        %s191 = sand.u32 %s91, 1
        %s192 = smul.addr %s191, 96
        %s193 = scalar_lea.vmem [#allocation7], %s192
        %v195 = vld [vmem:[#allocation5] sm:$0xf]
        %v196 = vld [vmem:[#allocation5 + $0x4] sm:$0xf]
        %v197 = vld [vmem:[#allocation5 + $0x8] sm:$0xf]
        %v198 = vld [vmem:[#allocation5 + $0xc] sm:$0xf]
        %v199 = vld [vmem:[#allocation5 + $0x10] sm:$0xf]
        %v200 = vld [vmem:[#allocation5 + $0x14] sm:$0xf]
        %v201 = vld [vmem:[#allocation5 + $0x18] sm:$0xf]
        %v202 = vld [vmem:[#allocation5 + $0x1c] sm:$0xf]
        %v203 = vld [vmem:[#allocation5 + $0x20] sm:$0xf]
        %v204 = vld [vmem:[#allocation5 + $0x24] sm:$0xf]
        %v205 = vld [vmem:[#allocation5 + $0x28] sm:$0xf]
        %v206 = vld [vmem:[#allocation5 + $0x2c] sm:$0xf]
        %v207 = vld [vmem:[#allocation5 + $0x30] sm:$0xf]
        %v208 = vld [vmem:[#allocation5 + $0x34] sm:$0xf]
        %v209 = vld [vmem:[#allocation5 + $0x38] sm:$0xf]
        %v210 = vld [vmem:[#allocation5 + $0x3c] sm:$0xf]
        %v211 = vld [vmem:[#allocation5 + $0x40] sm:$0xf]
        %v212 = vld [vmem:[#allocation5 + $0x44] sm:$0xf]
        %v213 = vld [vmem:[#allocation5 + $0x48] sm:$0xf]
        %v214 = vld [vmem:[#allocation5 + $0x4c] sm:$0xf]
        %v215 = vld [vmem:[#allocation5 + $0x50] sm:$0xf]
        %v216 = vld [vmem:[#allocation5 + $0x54] sm:$0xf]
        %v217 = vld [vmem:[#allocation5 + $0x58] sm:$0xf]
        %v218 = vld [vmem:[#allocation5 + $0x5c] sm:$0xf]
        %v219 = vld [vmem:[%s169] sm:$0xf]
        %v220 = vld [vmem:[%s169 + $0x4] sm:$0xf]
        %v221 = vld [vmem:[%s169 + $0x8] sm:$0xf]
        %v222 = vld [vmem:[%s169 + $0xc] sm:$0xf]
        %v223 = vld [vmem:[%s169 + $0x10] sm:$0xf]
        %v224 = vld [vmem:[%s169 + $0x14] sm:$0xf]
        %v225 = vld [vmem:[%s169 + $0x18] sm:$0xf]
        %v226 = vld [vmem:[%s169 + $0x1c] sm:$0xf]
        %v227 = vld [vmem:[%s169 + $0x20] sm:$0xf]
        %v228 = vld [vmem:[%s169 + $0x24] sm:$0xf]
        %v229 = vld [vmem:[%s169 + $0x28] sm:$0xf]
        %v230 = vld [vmem:[%s169 + $0x2c] sm:$0xf]
        %v231 = vld [vmem:[%s169 + $0x30] sm:$0xf]
        %v232 = vld [vmem:[%s169 + $0x34] sm:$0xf]
        %v233 = vld [vmem:[%s169 + $0x38] sm:$0xf]
        %v234 = vld [vmem:[%s169 + $0x3c] sm:$0xf]
        %v259 = vunpack.c.l.b16 %v195
        %v260 = vunpack.c.l.b16 %v196
        %v261 = vunpack.c.l.b16 %v197
        %v262 = vunpack.c.l.b16 %v198
        %v263 = vunpack.c.l.b16 %v199
        %v264 = vunpack.c.l.b16 %v200
        %v265 = vunpack.c.l.b16 %v201
        %v266 = vunpack.c.l.b16 %v202
        %v267 = vunpack.c.l.b16 %v203
        %v268 = vunpack.c.l.b16 %v204
        %v269 = vunpack.c.l.b16 %v205
        %v270 = vunpack.c.l.b16 %v206
        %v271 = vunpack.c.l.b16 %v207
        %v272 = vunpack.c.l.b16 %v208
        %v273 = vunpack.c.l.b16 %v209
        %v274 = vunpack.c.l.b16 %v210
        %v275 = vunpack.c.l.b16 %v211
        %v276 = vunpack.c.l.b16 %v212
        %v277 = vunpack.c.l.b16 %v213
        %v278 = vunpack.c.l.b16 %v214
        %v279 = vunpack.c.l.b16 %v215
        %v280 = vunpack.c.l.b16 %v216
        %v281 = vunpack.c.l.b16 %v217
        %v282 = vunpack.c.l.b16 %v218
        %v283 = vpack.c.b16 %v260, %v259
        %v284 = vpack.c.b16 %v262, %v261
        %v285 = vpack.c.b16 %v264, %v263
        %v286 = vpack.c.b16 %v266, %v265
        %v287 = vpack.c.b16 %v268, %v267
        %v288 = vpack.c.b16 %v270, %v269
        %v289 = vpack.c.b16 %v272, %v271
        %v290 = vpack.c.b16 %v274, %v273
        %v291 = vpack.c.b16 %v276, %v275
        %v292 = vpack.c.b16 %v278, %v277
        %v293 = vpack.c.b16 %v280, %v279
        %v294 = vpack.c.b16 %v282, %v281
        %v323 = vunpack.c.l.b16 %v219
        %v324 = vunpack.c.l.b16 %v220
        %v325 = vunpack.c.l.b16 %v221
        %v326 = vunpack.c.l.b16 %v222
        %v327 = vunpack.c.l.b16 %v223
        %v328 = vunpack.c.l.b16 %v224
        %v329 = vunpack.c.l.b16 %v225
        %v330 = vunpack.c.l.b16 %v226
        %v331 = vunpack.c.l.b16 %v227
        %v332 = vunpack.c.l.b16 %v228
        %v333 = vunpack.c.l.b16 %v229
        %v334 = vunpack.c.l.b16 %v230
        %v335 = vunpack.c.l.b16 %v231
        %v336 = vunpack.c.l.b16 %v232
        %v337 = vunpack.c.l.b16 %v233
        %v338 = vunpack.c.l.b16 %v234
        %v339 = vpack.c.b16 %v324, %v323
        %v340 = vpack.c.b16 %v326, %v325
        %v341 = vpack.c.b16 %v328, %v327
        %v342 = vpack.c.b16 %v330, %v329
        %v343 = vpack.c.b16 %v332, %v331
        %v344 = vpack.c.b16 %v334, %v333
        %v345 = vpack.c.b16 %v336, %v335
        %v346 = vpack.c.b16 %v338, %v337
        %355 = vmatprep.subr.bf16.mxu0 0
        %356 = vmatpush1.bf16.msra.mxu0 %v339
        %357 = vmatprep.subr.bf16.mxu0 0
        %358 = vmatpush1.bf16.msra.mxu0 %v340
        %359 = vmatprep.subr.bf16.mxu0 0
        %360 = vmatpush1.bf16.msra.mxu0 %v341
        %361 = vmatprep.subr.bf16.mxu0 0
        %362 = vmatpush1.bf16.msra.mxu0 %v342
        %363 = vmatprep.subr.bf16.mxu0 0
        %364 = vmatpush1.bf16.msra.mxu0 %v343
        %365 = vmatprep.subr.bf16.mxu0 0
        %366 = vmatpush1.bf16.msra.mxu0 %v344
        %367 = vmatprep.subr.bf16.mxu0 0
        %368 = vmatpush1.bf16.msra.mxu0 %v345
        %369 = vmatprep.subr.bf16.mxu0 0
        %370 = vmatpush1.bf16.msra.mxu0 %v346
        %371 = vmatprep.subr.bf16.mxu0 0
        %372 = vmatpush1.bf16.msra.mxu0 0
        %373 = vmatprep.subr.bf16.mxu0 0
        %374 = vmatpush1.bf16.msra.mxu0 0
        %375 = vmatprep.subr.bf16.mxu0 0
        %376 = vmatpush1.bf16.msra.mxu0 0
        %377 = vmatprep.subr.bf16.mxu0 0
        %378 = vmatpush1.bf16.msra.mxu0 0
        %379 = vmatprep.subr.bf16.mxu0 0
        %380 = vmatpush1.bf16.msra.mxu0 0
        %381 = vmatprep.subr.bf16.mxu0 0
        %382 = vmatpush1.bf16.msra.mxu0 0
        %383 = vmatprep.subr.bf16.mxu0 0
        %384 = vmatpush1.bf16.msra.mxu0 0
        %385 = vmatprep.subr.bf16.mxu0 0
        %386 = vmatpush1.bf16.msra.mxu0 0
        %387 = vmatprep.mubr.bf16.mxu0 0
        %388 = vmatmul.mubr.bf16.gmra.mrb[0].mxu0 %v283
        %v389 = vpop.f32.mrb[0].mxu0
        %v390 = vadd.f32 0.0, %v389
        %v391 = vpop.f32.mrb[0].mxu0
        %v392 = vpop.f32.mrb[0].mxu0
        %v393 = vadd.f32 0.0, %v392
        %v394 = vpop.f32.mrb[0].mxu0
        %395 = vmatprep.mubr.bf16.mxu0 0
        %396 = vmatmul.mubr.bf16.gmra.mrb[0].mxu0 %v284
        %v397 = vpop.f32.mrb[0].mxu0
        %v398 = vadd.f32 0.0, %v397
        %v399 = vpop.f32.mrb[0].mxu0
        %v400 = vpop.f32.mrb[0].mxu0
        %v401 = vadd.f32 0.0, %v400
        %v402 = vpop.f32.mrb[0].mxu0
        %403 = vmatprep.mubr.bf16.mxu0 0
        %404 = vmatmul.mubr.bf16.gmra.mrb[0].mxu0 %v285
        %v405 = vpop.f32.mrb[0].mxu0
        %v406 = vadd.f32 0.0, %v405
        %v407 = vpop.f32.mrb[0].mxu0
        %v408 = vpop.f32.mrb[0].mxu0
        %v409 = vadd.f32 0.0, %v408
        %v410 = vpop.f32.mrb[0].mxu0
        %411 = vmatprep.mubr.bf16.mxu0 0
        %412 = vmatmul.mubr.bf16.gmra.mrb[0].mxu0 %v286
        %v413 = vpop.f32.mrb[0].mxu0
        %v414 = vadd.f32 0.0, %v413
        %v415 = vpop.f32.mrb[0].mxu0
        %v416 = vpop.f32.mrb[0].mxu0
        %v417 = vadd.f32 0.0, %v416
        %v418 = vpop.f32.mrb[0].mxu0
        %419 = vmatprep.mubr.bf16.mxu0 0
        %420 = vmatmul.mubr.bf16.gmra.mrb[0].mxu0 %v287
        %v421 = vpop.f32.mrb[0].mxu0
        %v422 = vadd.f32 0.0, %v421
        %v423 = vpop.f32.mrb[0].mxu0
        %v424 = vpop.f32.mrb[0].mxu0
        %v425 = vadd.f32 0.0, %v424
        %v426 = vpop.f32.mrb[0].mxu0
        %427 = vmatprep.mubr.bf16.mxu0 0
        %428 = vmatmul.mubr.bf16.gmra.mrb[0].mxu0 %v288
        %v429 = vpop.f32.mrb[0].mxu0
        %v430 = vadd.f32 0.0, %v429
        %v431 = vpop.f32.mrb[0].mxu0
        %v432 = vpop.f32.mrb[0].mxu0
        %v433 = vadd.f32 0.0, %v432
        %v434 = vpop.f32.mrb[0].mxu0
        %435 = vmatprep.mubr.bf16.mxu0 0
        %436 = vmatmul.mubr.bf16.gmra.mrb[0].mxu0 %v289
        %v437 = vpop.f32.mrb[0].mxu0
        %v438 = vadd.f32 0.0, %v437
        %v439 = vpop.f32.mrb[0].mxu0
        %v440 = vpop.f32.mrb[0].mxu0
        %v441 = vadd.f32 0.0, %v440
        %v442 = vpop.f32.mrb[0].mxu0
        %443 = vmatprep.mubr.bf16.mxu0 0
        %444 = vmatmul.mubr.bf16.gmra.mrb[0].mxu0 %v290
        %v445 = vpop.f32.mrb[0].mxu0
        %v446 = vadd.f32 0.0, %v445
        %v447 = vpop.f32.mrb[0].mxu0
        %v448 = vpop.f32.mrb[0].mxu0
        %v449 = vadd.f32 0.0, %v448
        %v450 = vpop.f32.mrb[0].mxu0
        %451 = vmatprep.mubr.bf16.mxu0 0
        %452 = vmatmul.mubr.bf16.gmra.mrb[0].mxu0 %v291
        %v453 = vpop.f32.mrb[0].mxu0
        %v454 = vadd.f32 0.0, %v453
        %v455 = vpop.f32.mrb[0].mxu0
        %v456 = vpop.f32.mrb[0].mxu0
        %v457 = vadd.f32 0.0, %v456
        %v458 = vpop.f32.mrb[0].mxu0
        %459 = vmatprep.mubr.bf16.mxu0 0
        %460 = vmatmul.mubr.bf16.gmra.mrb[0].mxu0 %v292
        %v461 = vpop.f32.mrb[0].mxu0
        %v462 = vadd.f32 0.0, %v461
        %v463 = vpop.f32.mrb[0].mxu0
        %v464 = vpop.f32.mrb[0].mxu0
        %v465 = vadd.f32 0.0, %v464
        %v466 = vpop.f32.mrb[0].mxu0
        %467 = vmatprep.mubr.bf16.mxu0 0
        %468 = vmatmul.mubr.bf16.gmra.mrb[0].mxu0 %v293
        %v469 = vpop.f32.mrb[0].mxu0
        %v470 = vadd.f32 0.0, %v469
        %v471 = vpop.f32.mrb[0].mxu0
        %v472 = vpop.f32.mrb[0].mxu0
        %v473 = vadd.f32 0.0, %v472
        %v474 = vpop.f32.mrb[0].mxu0
        %475 = vmatprep.mubr.bf16.mxu0 0
        %476 = vmatmul.mubr.bf16.gmra.mrb[0].mxu0 %v294
        %v477 = vpop.f32.mrb[0].mxu0
        %v478 = vadd.f32 0.0, %v477
        %v479 = vpop.f32.mrb[0].mxu0
        %v480 = vpop.f32.mrb[0].mxu0
        %v481 = vadd.f32 0.0, %v480
        %v482 = vpop.f32.mrb[0].mxu0
        %483 = vdwg.mxu0
        %v484 = vpack.c.bf16 %v393, %v390
        %v485 = vpack.c.bf16 %v401, %v398
        %v486 = vpack.c.bf16 %v409, %v406
        %v487 = vpack.c.bf16 %v417, %v414
        %v488 = vpack.c.bf16 %v425, %v422
        %v489 = vpack.c.bf16 %v433, %v430
        %v490 = vpack.c.bf16 %v441, %v438
        %v491 = vpack.c.bf16 %v449, %v446
        %v492 = vpack.c.bf16 %v457, %v454
        %v493 = vpack.c.bf16 %v465, %v462
        %v494 = vpack.c.bf16 %v473, %v470
        %v495 = vpack.c.bf16 %v481, %v478
        %v508 = vunpack.c.l.b16 %v484
        %v509 = vunpack.c.h.b16 %v484
        %v510 = vunpack.c.l.b16 %v485
        %v511 = vunpack.c.h.b16 %v485
        %v512 = vunpack.c.l.b16 %v486
        %v513 = vunpack.c.h.b16 %v486
        %v514 = vunpack.c.l.b16 %v487
        %v515 = vunpack.c.h.b16 %v487
        %v516 = vunpack.c.l.b16 %v488
        %v517 = vunpack.c.h.b16 %v488
        %v518 = vunpack.c.l.b16 %v489
        %v519 = vunpack.c.h.b16 %v489
        %v520 = vunpack.c.l.b16 %v490
        %v521 = vunpack.c.h.b16 %v490
        %v522 = vunpack.c.l.b16 %v491
        %v523 = vunpack.c.h.b16 %v491
        %v524 = vunpack.c.l.b16 %v492
        %v525 = vunpack.c.h.b16 %v492
        %v526 = vunpack.c.l.b16 %v493
        %v527 = vunpack.c.h.b16 %v493
        %v528 = vunpack.c.l.b16 %v494
        %v529 = vunpack.c.h.b16 %v494
        %v530 = vunpack.c.l.b16 %v495
        %v531 = vunpack.c.h.b16 %v495
        %v532 = vpack.c.b16 %v508, %v508
        %v533 = vpack.c.b16 %v509, %v509
        %v534 = vpack.c.b16 %v510, %v510
        %v535 = vpack.c.b16 %v511, %v511
        %v536 = vpack.c.b16 %v512, %v512
        %v537 = vpack.c.b16 %v513, %v513
        %v538 = vpack.c.b16 %v514, %v514
        %v539 = vpack.c.b16 %v515, %v515
        %v540 = vpack.c.b16 %v516, %v516
        %v541 = vpack.c.b16 %v517, %v517
        %v542 = vpack.c.b16 %v518, %v518
        %v543 = vpack.c.b16 %v519, %v519
        %v544 = vpack.c.b16 %v520, %v520
        %v545 = vpack.c.b16 %v521, %v521
        %v546 = vpack.c.b16 %v522, %v522
        %v547 = vpack.c.b16 %v523, %v523
        %v548 = vpack.c.b16 %v524, %v524
        %v549 = vpack.c.b16 %v525, %v525
        %v550 = vpack.c.b16 %v526, %v526
        %v551 = vpack.c.b16 %v527, %v527
        %v552 = vpack.c.b16 %v528, %v528
        %v553 = vpack.c.b16 %v529, %v529
        %v554 = vpack.c.b16 %v530, %v530
        %v555 = vpack.c.b16 %v531, %v531
        %580 = vst [vmem:[%s193] sm:$0xf] %v532
        %581 = vst [vmem:[%s193 + $0x4] sm:$0xf] %v533
        %582 = vst [vmem:[%s193 + $0x8] sm:$0xf] %v534
        %583 = vst [vmem:[%s193 + $0xc] sm:$0xf] %v535
        %584 = vst [vmem:[%s193 + $0x10] sm:$0xf] %v536
        %585 = vst [vmem:[%s193 + $0x14] sm:$0xf] %v537
        %586 = vst [vmem:[%s193 + $0x18] sm:$0xf] %v538
        %587 = vst [vmem:[%s193 + $0x1c] sm:$0xf] %v539
        %588 = vst [vmem:[%s193 + $0x20] sm:$0xf] %v540
        %589 = vst [vmem:[%s193 + $0x24] sm:$0xf] %v541
        %590 = vst [vmem:[%s193 + $0x28] sm:$0xf] %v542
        %591 = vst [vmem:[%s193 + $0x2c] sm:$0xf] %v543
        %592 = vst [vmem:[%s193 + $0x30] sm:$0xf] %v544
        %593 = vst [vmem:[%s193 + $0x34] sm:$0xf] %v545
        %594 = vst [vmem:[%s193 + $0x38] sm:$0xf] %v546
        %595 = vst [vmem:[%s193 + $0x3c] sm:$0xf] %v547
        %596 = vst [vmem:[%s193 + $0x40] sm:$0xf] %v548
        %597 = vst [vmem:[%s193 + $0x44] sm:$0xf] %v549
        %598 = vst [vmem:[%s193 + $0x48] sm:$0xf] %v550
        %599 = vst [vmem:[%s193 + $0x4c] sm:$0xf] %v551
        %600 = vst [vmem:[%s193 + $0x50] sm:$0xf] %v552
        %601 = vst [vmem:[%s193 + $0x54] sm:$0xf] %v553
        %602 = vst [vmem:[%s193 + $0x58] sm:$0xf] %v554
        %603 = vst [vmem:[%s193 + $0x5c] sm:$0xf] %v555
        %s604 = sand.u32 %s91, 1
        %s605 = scalar_lea.sflag [#allocation4], %s604
        %s606 = sand.u32 %s91, 1
        %s607 = smul.addr %s606, 96
        %s608 = scalar_lea.vmem [#allocation7], %s607
        // Predicated region
        $region37: #{tpu_custom_call.1} parent=27 // pred_check
          %p609 = pneg %p101
        $region38: #{tpu_custom_call.1} parent=27 // pred_check_branch
          %611 = sbr.rel (%p609) target = $region40
        $region39: #{tpu_custom_call.1} parent=27 // pred_region
          %s613 = ssub.s32 1536, 1536
          %614 = vsyncadd %s605, %s613
          %s615 = smul.addr %s24, 24
          %s616 = sadd.s32 %s25, %s615
          %s617 = smul.addr %s616, 64
          %s618 = scalar_lea.hbm %s2, %s617
          %s619 = sshll.u32 %s608, 4
          %s620 = int_to_ptr.vmem [resolvable:$true] %s619
          %625 = dma.vmem_to_hbm [thread:$0]  %s620, 1536, %s618, %s605, 64, 64, 4
        $region40: #{tpu_custom_call.1} parent=27 // pred_fallthru
          _
      $region28: #{tpu_custom_call.1} parent=5 // pred_fallthru
        _
      %p626 = scmp.le.s32.totalorder 2, %s15
      // Predicated region
      $region41: #{tpu_custom_call.1} parent=5 // pred_check
        %p627 = pneg %p626
      $region42: #{tpu_custom_call.1} parent=5 // pred_check_branch
        %629 = sbr.rel (%p627) target = $region44
      $region43: #{tpu_custom_call.1} parent=5 // pred_region
        %s630 = ssub.s32 %s15, 2
        // Predicated region
        $region45: #{tpu_custom_call.1} parent=43 // pred_check
          %p631 = pneg %p107
        $region46: #{tpu_custom_call.1} parent=43 // pred_check_branch
          %633 = sbr.rel (%p631) target = $region48
        $region47: #{tpu_custom_call.1} parent=43 // pred_region
          %s634 = sand.u32 %s92, 1
          %s635 = scalar_lea.sflag [#allocation4], %s634
          %s636 = sand.u32 %s92, 1
          %s637 = smul.addr %s636, 96
          %s638 = scalar_lea.vmem [#allocation7], %s637
          %639 = dma.done %s635, 1536
        $region48: #{tpu_custom_call.1} parent=43 // pred_fallthru
          _
      $region44: #{tpu_custom_call.1} parent=5 // pred_fallthru
        _
    $region6: #{tpu_custom_call.1} parent=1 // loop_footer
      %s19 = sadd.s32 1, %s15
    $region7: #{tpu_custom_call.1} parent=1 // loop_footer_branch
      %14 = sbr.rel target = $region3
    $region8: #{tpu_custom_call.1} parent=1 // loop_exit
      _
    %640 = vsyncpa [#allocation3], 1
    %s641 = scalar_lea.sflag [#allocation3], 1
    %642 = vsyncpa %s641, 1
    %643 = vsyncpa [#allocation6], 1
    %644 = vsyncpa [#allocation4], 1
    %s645 = scalar_lea.sflag [#allocation4], 1
    %646 = vsyncpa %s645, 1

</llo_original>
